<compile_context>
chip_gen: v5e
topology: v5e:2x2
jax: 0.10.0
libtpu: 0.0.40
codegen_flags: <defaults>
</compile_context>

<pallas_src>
import functools
from typing import NamedTuple

import jax
import jax.numpy as jnp
from jax.experimental import pallas as pl
from jax.experimental.pallas import tpu as pltpu


def _round_up(x, m):
    return (x + m - 1) // m * m


def _cdiv(a, b):
    return -(-a // b)


class LinearParams(NamedTuple):
    """Pre-converted Linear parameters (built ONCE at init, not per forward)."""
    w: jax.Array        # (D, out_pad) in matmul dtype, out_pad = num_n * tn_eff
    b: jax.Array        # (1, out_pad) f32
    out_hsz: int        # original (unpadded) output width
    tn_eff: int         # lane-dense out tile width (multiple of 128)


def prepare_linear_params(weight_t, bias, *, matmul_dtype=jnp.bfloat16, tn=512):
    """One-time weight preparation: cast to the MXU dtype and pad the output dim
    to num_tiles * tn_eff where tn_eff is the smallest 128-multiple tile width
    that covers out_hsz in ceil(out_128 / tn) tiles (keeps padding minimal)."""
    d, out_hsz = weight_t.shape
    out_128 = _round_up(out_hsz, 128)
    num_n = max(1, _cdiv(out_128, tn))
    tn_eff = _round_up(_cdiv(out_128, num_n), 128)
    # Don't leave the 256-wide v6e/v7x MXU half-empty on N when out allows it.
    if out_128 >= 256 and tn_eff < 256:
        tn_eff = 256
        num_n = _cdiv(out_128, tn_eff)
    out_pad = num_n * tn_eff

    w = weight_t.astype(matmul_dtype)
    b2d = bias.reshape(1, out_hsz).astype(jnp.float32)
    if out_pad != out_hsz:
        w = jnp.pad(w, ((0, 0), (0, out_pad - out_hsz)))
        b2d = jnp.pad(b2d, ((0, 0), (0, out_pad - out_hsz)))
    return LinearParams(w=w, b=b2d, out_hsz=out_hsz, tn_eff=tn_eff)


# ---------------------------------------------------------------------------
# Kernels
# ---------------------------------------------------------------------------

def _ln_linear_kernel(x_ref, gamma_ref, beta_ref, w_ref, bias_ref, o_ref, xn_ref,
                      *, eps, use_relu):
    # x_ref: (tm, D) f32, gamma/beta: (1, D) f32, w: (D, tn), bias: (1, tn) f32,
    # o: (tm, tn), xn_ref: (tm, D) VMEM scratch in the matmul dtype.
    #
    # INVARIANT: the LayerNorm result is computed only at j == 0 and reused by
    # all j > 0 output tiles of the same row tile.  This is only correct because
    # the grid iterates i-outer / j-inner and the j axis runs serially on one
    # core ("arbitrary").  Do NOT mark axis 1 "parallel" or reorder the grid.
    j = pl.program_id(1)

    @pl.when(j == 0)
    def _():
        x = x_ref[...].astype(jnp.float32)
        mean = jnp.mean(x, axis=-1, keepdims=True)
        var = jnp.mean(jnp.square(x - mean), axis=-1, keepdims=True)
        x = (x - mean) * jax.lax.rsqrt(var + eps)
        x = x * gamma_ref[...] + beta_ref[...]
        # Dropout: identity (inference mode).
        xn_ref[...] = x.astype(xn_ref.dtype)

    y = jnp.dot(xn_ref[...], w_ref[...], preferred_element_type=jnp.float32)
    y = y + bias_ref[...]
    if use_relu:
        y = jnp.maximum(y, 0.0)
    o_ref[...] = y.astype(o_ref.dtype)


def _linear_kernel(x_ref, w_ref, bias_ref, o_ref, *, use_relu):
    # No-LayerNorm specialization: no scratch, no xn copy, straight MXU matmul.
    x = x_ref[...]
    if x.dtype != w_ref.dtype:
        x = x.astype(w_ref.dtype)
    y = jnp.dot(x, w_ref[...], preferred_element_type=jnp.float32) + bias_ref[...]
    if use_relu:
        y = jnp.maximum(y, 0.0)
    o_ref[...] = y.astype(o_ref.dtype)


def _pooled_linear_kernel(f_ref, w_ref, b_ref, o_ref):
    # Fused MySingleTrs head: pooled = 0.2*max(f, axis=1) + mean(f, axis=1),
    # then pooled @ w + b.  f: (B, n, D), w: (D, out_pad), b: (1, out_pad).
    f = f_ref[...].astype(jnp.float32)
    pooled = 0.2 * jnp.max(f, axis=1) + jnp.mean(f, axis=1)          # (B, D)
    y = jnp.dot(pooled.astype(w_ref.dtype), w_ref[...],
                preferred_element_type=jnp.float32)
    o_ref[...] = (y + b_ref[...]).astype(o_ref.dtype)


# ---------------------------------------------------------------------------
# Wrappers
# ---------------------------------------------------------------------------

def linear_layer_forward(x, params: LinearParams, *, gamma=None, beta=None,
                         layer_norm=True, relu=True, eps=1e-5, tm=384,
                         out_dtype=None, weight_buffers=2):
    """x: (N, L, D).  params: from prepare_linear_params (pre-cast/pre-padded
    weight).  Returns (N, L, out_hsz).

    Fuses (optional) LayerNorm -> Dropout(eval, identity) -> Linear -> (optional)
    ReLU.  Default tm=384 targets the v6e weight-DMA roofline; on v7x (64 MiB
    VMEM, 2 TCs) prefer tm<=256, on v5e larger tn (e.g. 1024) helps."""
    N, L, D = x.shape
    w, b2d, out_hsz, tn_eff = params
    assert w.shape[0] == D, "weight inner dim mismatch"
    out_pad = w.shape[1]
    matmul_dtype = w.dtype
    out_dtype = x.dtype if out_dtype is None else out_dtype
    rows = N * L

    # Row tiling: align to 16 for bf16 sublane packing (8 otherwise); pad the
    # ragged tail with zeros (sliced off below).
    row_align = 16 if matmul_dtype == jnp.bfloat16 else 8
    tm_eff = int(min(tm, _round_up(rows, row_align)))
    tm_eff = _round_up(tm_eff, row_align)
    # Megacore (v7x): make sure the "parallel" row axis has >= 2 steps whenever
    # the row count allows it, so the second TensorCore is not idle.
    if rows > row_align and _round_up(rows, tm_eff) // tm_eff < 2:
        tm_eff = _round_up(_cdiv(rows, 2), row_align)
    rows_pad = _round_up(rows, tm_eff)

    x2d = x.reshape(rows, D)
    if rows_pad != rows:
        x2d = jnp.pad(x2d, ((0, rows_pad - rows), (0, 0)))

    grid = (rows_pad // tm_eff, out_pad // tn_eff)

    # Optionally deepen the weight prefetch if profiling shows exposed DMA at
    # row-tile boundaries (default 2 = standard double buffering).
    if weight_buffers and weight_buffers > 2:
        w_spec = pl.BlockSpec((D, tn_eff), lambda i, j: (0, j),
                              pipeline_mode=pl.Buffered(weight_buffers))
    else:
        w_spec = pl.BlockSpec((D, tn_eff), lambda i, j: (0, j))

    # VMEM budget from the actual resident footprint (double-buffered tiles,
    # scratch, params) + 50% headroom; floor 32 MiB, cap 96 MiB.
    x_b = jnp.dtype(x2d.dtype).itemsize
    w_b = jnp.dtype(matmul_dtype).itemsize
    o_b = jnp.dtype(out_dtype).itemsize
    nbuf_w = max(2, weight_buffers or 2)
    need = (2 * tm_eff * D * x_b + nbuf_w * D * tn_eff * w_b
            + 2 * tm_eff * tn_eff * o_b + 2 * tn_eff * 4 + 4 * D * 4)
    if layer_norm:
        need += tm_eff * D * w_b
    vmem_limit = int(min(max(int(need * 1.5) + (4 << 20), 32 << 20), 96 << 20))

    if layer_norm:
        assert gamma is not None and beta is not None
        gamma2d = gamma.reshape(1, D).astype(jnp.float32)
        beta2d = beta.reshape(1, D).astype(jnp.float32)
        kernel = functools.partial(_ln_linear_kernel, eps=eps, use_relu=relu)
        in_specs = [
            pl.BlockSpec((tm_eff, D), lambda i, j: (i, 0)),   # x row tile
            pl.BlockSpec((1, D), lambda i, j: (0, 0)),        # LN gamma
            pl.BlockSpec((1, D), lambda i, j: (0, 0)),        # LN beta
            w_spec,                                           # weight tile
            pl.BlockSpec((1, tn_eff), lambda i, j: (0, j)),   # bias tile
        ]
        scratch_shapes = [pltpu.VMEM((tm_eff, D), matmul_dtype)]
        # j must stay serial ("arbitrary"): the xn scratch is filled at j == 0.
        semantics = ("parallel", "arbitrary")
        args = (x2d, gamma2d, beta2d, w, b2d)
    else:
        kernel = functools.partial(_linear_kernel, use_relu=relu)
        in_specs = [
            pl.BlockSpec((tm_eff, D), lambda i, j: (i, 0)),   # x row tile
            w_spec,                                           # weight tile
            pl.BlockSpec((1, tn_eff), lambda i, j: (0, j)),   # bias tile
        ]
        scratch_shapes = []
        semantics = ("parallel", "parallel")
        args = (x2d, w, b2d)

    out2d = pl.pallas_call(
        kernel,
        out_shape=jax.ShapeDtypeStruct((rows_pad, out_pad), out_dtype),
        grid_spec=pltpu.PrefetchScalarGridSpec(
            num_scalar_prefetch=0,
            grid=grid,
            in_specs=in_specs,
            out_specs=pl.BlockSpec((tm_eff, tn_eff), lambda i, j: (i, j)),
            scratch_shapes=scratch_shapes,
        ),
        compiler_params=pltpu.CompilerParams(
            dimension_semantics=semantics,
            vmem_limit_bytes=vmem_limit,
        ),
    )(*args)

    return out2d[:rows, :out_hsz].reshape(N, L, out_hsz)


def my_single_trs_head(f_embedding, head_params: LinearParams):
    """MySingleTrs head: 0.2*max(f, dim=1) + mean(f, dim=1) followed by the
    `transform` Linear, fused in a single tiny pallas_call (f_embedding is read
    from HBM exactly once; no tiled-GEMM per-step overhead at M = batch)."""
    B, n, D = f_embedding.shape
    w, b2d, out_hsz, _ = head_params
    assert w.shape[0] == D
    out_pad = w.shape[1]

    out = pl.pallas_call(
        _pooled_linear_kernel,
        out_shape=jax.ShapeDtypeStruct((B, out_pad), jnp.float32),
        grid_spec=pltpu.PrefetchScalarGridSpec(
            num_scalar_prefetch=0,
            grid=(1,),
            in_specs=[
                pl.BlockSpec((B, n, D), lambda i: (0, 0, 0)),
                pl.BlockSpec((D, out_pad), lambda i: (0, 0)),
                pl.BlockSpec((1, out_pad), lambda i: (0, 0)),
            ],
            out_specs=pl.BlockSpec((B, out_pad), lambda i: (0, 0)),
        ),
        compiler_params=pltpu.CompilerParams(
            dimension_semantics=("arbitrary",),
        ),
    )(f_embedding, w, b2d)
    return out[:, :out_hsz]


# ---------------------------------------------------------------------------
# Reference + tests
# ---------------------------------------------------------------------------

def _reference_ln_linear(x, gamma, beta, weight_t, bias, *, layer_norm=True,
                         relu=True, eps=1e-5):
    if layer_norm:
        mean = jnp.mean(x, axis=-1, keepdims=True)
        var = jnp.mean(jnp.square(x - mean), axis=-1, keepdims=True)
        x = (x - mean) / jnp.sqrt(var + eps)
        x = x * gamma + beta
    y = jnp.einsum("nld,dh->nlh", x, weight_t) + bias
    if relu:
        y = jnp.maximum(y, 0.0)
    return y


if __name__ == "__main__":
    # Small analog of the module's shapes (dim 1536 -> 96, seq 32 -> 30,
    # FFN out 6144 -> 500, transform out 256 -> 200).
    N, L, in_hsz, out_hsz = 2, 30, 96, 500

    key = jax.random.PRNGKey(0)
    kx, kw, kb, kw2, kb2, kf = jax.random.split(key, 6)

    x = jax.random.normal(kx, (N, L, in_hsz), dtype=jnp.float32)
    gamma = jnp.ones((in_hsz,), dtype=jnp.float32)
    beta = jnp.zeros((in_hsz,), dtype=jnp.float32)
    bound = 1.0 / (in_hsz ** 0.5)
    weight_t = jax.random.uniform(kw, (in_hsz, out_hsz), jnp.float32, -bound, bound)
    bias = jax.random.uniform(kb, (out_hsz,), jnp.float32, -bound, bound)

    ref = _reference_ln_linear(x, gamma, beta, weight_t, bias,
                               layer_norm=True, relu=True)

    # f32-operand path (tight tolerance).  tm=32 / tn=256 exercise the 2-D grid,
    # row-tail padding (60 -> 64) and out padding + slice-back (500 -> 512).
    p_f32 = prepare_linear_params(weight_t, bias, matmul_dtype=jnp.float32, tn=256)
    out_f32 = linear_layer_forward(x, p_f32, gamma=gamma, beta=beta,
                                   layer_norm=True, relu=True, tm=32)
    out_f32 = jax.block_until_ready(out_f32)
    assert out_f32.shape == (N, L, out_hsz)
    assert jnp.allclose(out_f32, ref, atol=1e-4, rtol=1e-4), "f32 path mismatch"

    # Fast path: bf16 MXU operands, f32 accumulation, default tm (exercises the
    # >=2-row-tile megacore split), bf16 output (FFN up-projection style).
    p_bf16 = prepare_linear_params(weight_t, bias, matmul_dtype=jnp.bfloat16, tn=256)
    out_bf16 = linear_layer_forward(x, p_bf16, gamma=gamma, beta=beta,
                                    layer_norm=True, relu=True,
                                    out_dtype=jnp.bfloat16)
    out_bf16 = jax.block_until_ready(out_bf16)
    assert out_bf16.dtype == jnp.bfloat16
    assert jnp.allclose(out_bf16.astype(jnp.float32), ref,
                        atol=5e-2, rtol=5e-2), "bf16 path mismatch"

    # No-LayerNorm specialization (no scratch / no xn copy).
    ref_nl = _reference_ln_linear(x, gamma, beta, weight_t, bias,
                                  layer_norm=False, relu=False)
    out_nl = linear_layer_forward(x, p_f32, layer_norm=False, relu=False, tm=32)
    out_nl = jax.block_until_ready(out_nl)
    assert jnp.allclose(out_nl, ref_nl, atol=1e-4, rtol=1e-4), "no-LN path mismatch"

    # MySingleTrs head: fused 0.2*max + mean pooling, then `transform` Linear.
    B, n_frames, D_h, t_out = 2, 32, 96, 200
    f_emb = jax.random.normal(kf, (B, n_frames, D_h), dtype=jnp.float32)
    w2 = jax.random.uniform(kw2, (D_h, t_out), jnp.float32, -bound, bound)
    b2 = jax.random.uniform(kb2, (t_out,), jnp.float32, -bound, bound)
    p_head = prepare_linear_params(w2, b2, matmul_dtype=jnp.bfloat16)
    head = jax.block_until_ready(my_single_trs_head(f_emb, p_head))
    pooled_ref = 0.2 * jnp.max(f_emb, axis=1) + jnp.mean(f_emb, axis=1)
    head_ref = pooled_ref @ w2 + b2
    assert head.shape == (B, t_out)
    assert jnp.allclose(head, head_ref, atol=5e-2, rtol=5e-2), "head mismatch"

    print("KERNEL_OK")
</pallas_src>

<mosaic_0001>
module attributes {stable_mosaic.version = 11 : i64} {
  func.func @_ln_linear_kernel(%arg0: i32, %arg1: i32, %arg2: memref<32x96xf32, #tpu.memory_space<vmem>>, %arg3: memref<1x96xf32, #tpu.memory_space<vmem>>, %arg4: memref<1x96xf32, #tpu.memory_space<vmem>>, %arg5: memref<96x256xf32, #tpu.memory_space<vmem>>, %arg6: memref<1x256xf32, #tpu.memory_space<vmem>>, %arg7: memref<32x256xf32, #tpu.memory_space<vmem>>, %arg8: memref<32x96xf32, #tpu.memory_space<vmem>>) attributes {dimension_semantics = [#tpu.dimension_semantics<parallel>, #tpu.dimension_semantics<arbitrary>], iteration_bounds = array<i64: 2, 2>, scalar_prefetch = 0 : i64, scratch_operands = 1 : i64, tpu.core_type = #tpu.core_type<tc>, window_params = [{transform_indices = @transform_0, window_bounds = array<i64: 32, 96>}, {pipeline_mode = #tpu.pipeline_mode<synchronous>, transform_indices = @transform_1, window_bounds = array<i64: 1, 96>}, {pipeline_mode = #tpu.pipeline_mode<synchronous>, transform_indices = @transform_2, window_bounds = array<i64: 1, 96>}, {transform_indices = @transform_3, window_bounds = array<i64: 96, 256>}, {transform_indices = @transform_4, window_bounds = array<i64: 1, 256>}, {transform_indices = @transform_5, window_bounds = array<i64: 32, 256>}]} {
    %c0_i32 = arith.constant 0 : i32
    %0 = arith.cmpi eq, %arg1, %c0_i32 : i32
    %1 = arith.extui %0 : i1 to i32
    %c0_i32_0 = arith.constant 0 : i32
    %2 = arith.cmpi ne, %1, %c0_i32_0 : i32
    scf.if %2 {
      %c0_9 = arith.constant 0 : index
      %c0_10 = arith.constant 0 : index
      %12 = vector.load %arg2[%c0_9, %c0_10] : memref<32x96xf32, #tpu.memory_space<vmem>>, vector<32x96xf32>
      %cst_11 = arith.constant dense<0.000000e+00> : vector<32xf32>
      %13 = vector.multi_reduction <add>, %12, %cst_11 [1] : vector<32x96xf32> to vector<32xf32>
      %14 = vector.shape_cast %13 : vector<32xf32> to vector<32x1xf32>
      %cst_12 = arith.constant 9.600000e+01 : f32
      %15 = vector.broadcast %cst_12 : f32 to vector<32x1xf32>
      %16 = arith.divf %14, %15 : vector<32x1xf32>
      %17 = vector.broadcast %16 : vector<32x1xf32> to vector<32x96xf32>
      %18 = arith.subf %12, %17 : vector<32x96xf32>
      %19 = arith.mulf %18, %18 : vector<32x96xf32>
      %cst_13 = arith.constant dense<0.000000e+00> : vector<32xf32>
      %20 = vector.multi_reduction <add>, %19, %cst_13 [1] : vector<32x96xf32> to vector<32xf32>
      %21 = vector.shape_cast %20 : vector<32xf32> to vector<32x1xf32>
      %cst_14 = arith.constant 9.600000e+01 : f32
      %22 = vector.broadcast %cst_14 : f32 to vector<32x1xf32>
      %23 = arith.divf %21, %22 : vector<32x1xf32>
      %24 = vector.broadcast %16 : vector<32x1xf32> to vector<32x96xf32>
      %25 = arith.subf %12, %24 : vector<32x96xf32>
      %cst_15 = arith.constant 9.99999974E-6 : f32
      %26 = vector.broadcast %cst_15 : f32 to vector<32x1xf32>
      %27 = arith.addf %23, %26 : vector<32x1xf32>
      %28 = math.rsqrt %27 : vector<32x1xf32>
      %29 = vector.broadcast %28 : vector<32x1xf32> to vector<32x96xf32>
      %30 = arith.mulf %25, %29 : vector<32x96xf32>
      %c0_16 = arith.constant 0 : index
      %c0_17 = arith.constant 0 : index
      %31 = vector.load %arg3[%c0_16, %c0_17] : memref<1x96xf32, #tpu.memory_space<vmem>>, vector<1x96xf32>
      %32 = vector.broadcast %31 : vector<1x96xf32> to vector<32x96xf32>
      %33 = arith.mulf %30, %32 : vector<32x96xf32>
      %c0_18 = arith.constant 0 : index
      %c0_19 = arith.constant 0 : index
      %34 = vector.load %arg4[%c0_18, %c0_19] : memref<1x96xf32, #tpu.memory_space<vmem>>, vector<1x96xf32>
      %35 = vector.broadcast %34 : vector<1x96xf32> to vector<32x96xf32>
      %36 = arith.addf %33, %35 : vector<32x96xf32>
      %c0_20 = arith.constant 0 : index
      %c0_21 = arith.constant 0 : index
      %37 = vector.load %arg8[%c0_20, %c0_21] : memref<32x96xf32, #tpu.memory_space<vmem>>, vector<32x96xf32>
      tpu.vector_store %arg8[%c0_20, %c0_21], %36 {strides = array<i32>} : memref<32x96xf32, #tpu.memory_space<vmem>>, vector<32x96xf32>,
    } else {
    }
    %c0 = arith.constant 0 : index
    %c0_1 = arith.constant 0 : index
    %3 = vector.load %arg8[%c0, %c0_1] : memref<32x96xf32, #tpu.memory_space<vmem>>, vector<32x96xf32>
    %c0_2 = arith.constant 0 : index
    %c0_3 = arith.constant 0 : index
    %4 = vector.load %arg5[%c0_2, %c0_3] : memref<96x256xf32, #tpu.memory_space<vmem>>, vector<96x256xf32>
    %cst = arith.constant dense<0.000000e+00> : vector<32x256xf32>
    %5 = tpu.matmul %3, %4, %cst {dimension_numbers = #tpu.dot_dimension_numbers<[1], [0], [0], [1], [0, 0, 1, 1], [], []>} : vector<32x96xf32>, vector<96x256xf32>, vector<32x256xf32> -> vector<32x256xf32>
    %c0_4 = arith.constant 0 : index
    %c0_5 = arith.constant 0 : index
    %6 = vector.load %arg6[%c0_4, %c0_5] : memref<1x256xf32, #tpu.memory_space<vmem>>, vector<1x256xf32>
    %7 = vector.broadcast %6 : vector<1x256xf32> to vector<32x256xf32>
    %8 = arith.addf %5, %7 : vector<32x256xf32>
    %cst_6 = arith.constant 0.000000e+00 : f32
    %9 = vector.broadcast %cst_6 : f32 to vector<32x256xf32>
    %10 = arith.maximumf %8, %9 : vector<32x256xf32>
    %c0_7 = arith.constant 0 : index
    %c0_8 = arith.constant 0 : index
    %11 = vector.load %arg7[%c0_7, %c0_8] : memref<32x256xf32, #tpu.memory_space<vmem>>, vector<32x256xf32>
    tpu.vector_store %arg7[%c0_7, %c0_8], %10 {strides = array<i32>} : memref<32x256xf32, #tpu.memory_space<vmem>>, vector<32x256xf32>,
    return
  }
  func.func @transform_0(%arg0: i32, %arg1: i32) -> (i32, i32) {
    %c0_i32 = arith.constant 0 : i32
    %c0_i32_0 = arith.constant 0 : i32
    return %arg0, %c0_i32 : i32, i32
  }
  func.func @transform_1(%arg0: i32, %arg1: i32) -> (i32, i32) {
    %c0_i32 = arith.constant 0 : i32
    %c0_i32_0 = arith.constant 0 : i32
    %c0_i32_1 = arith.constant 0 : i32
    return %c0_i32, %c0_i32_0 : i32, i32
  }
  func.func @transform_2(%arg0: i32, %arg1: i32) -> (i32, i32) {
    %c0_i32 = arith.constant 0 : i32
    %c0_i32_0 = arith.constant 0 : i32
    %c0_i32_1 = arith.constant 0 : i32
    return %c0_i32, %c0_i32_0 : i32, i32
  }
  func.func @transform_3(%arg0: i32, %arg1: i32) -> (i32, i32) {
    %c0_i32 = arith.constant 0 : i32
    %c0_i32_0 = arith.constant 0 : i32
    return %c0_i32, %arg1 : i32, i32
  }
  func.func @transform_4(%arg0: i32, %arg1: i32) -> (i32, i32) {
    %c0_i32 = arith.constant 0 : i32
    %c0_i32_0 = arith.constant 0 : i32
    return %c0_i32, %arg1 : i32, i32
  }
  func.func @transform_5(%arg0: i32, %arg1: i32) -> (i32, i32) {
    %c0_i32 = arith.constant 0 : i32
    return %arg0, %arg1 : i32, i32
  }
}

</mosaic_0001>

<llo_original>
// kernel: tpu_custom_call.1
$region0: #{tpu_custom_call.1}
  #allocation0 [shape = 'u32[]', space=smem, size = 0x4, offset = 0x4, fixed_abs, tag = 'smem constant byte address 0x4 - core index']
  #allocation1 [shape = 'u32[72,128]{1,0:T(1,128)}', space=vmem, size = 0x9000, scoped, tag = 'internal scratch']
  #allocation2 [shape = 'f32[32,96]{1,0:T(8,128)}', space=vmem, size = 0x4000, scoped, tag = 'scratch operand']
  %s0 = inlined_call_operand.hbm [shape: f32[64,96], index: 0, kind: input, shape index: {}]
  %s1 = inlined_call_operand.hbm [shape: f32[1,96], index: 1, kind: input, shape index: {}]
  %s2 = inlined_call_operand.vmem [shape: f32[1,96], index: 2, kind: input, shape index: {}]
  %s3 = inlined_call_operand.hbm [shape: f32[96,512], index: 3, kind: input, shape index: {}]
  %s4 = inlined_call_operand.hbm [shape: f32[1,512], index: 4, kind: input, shape index: {}]
  %s5 = inlined_call_operand.hbm [shape: f32[64,512], index: 5, kind: output, shape index: {}]
  %s6 = sld [smem:[#allocation0]]
  $region73: #{tpu_custom_call.1} parent=0
    _
  %s8 = ssub.s32 1, %s6
  %s9 = scalar_select 0, %s8, %s6
  $region1: #{tpu_custom_call.1} parent=0
    #allocation3 [shape = 'u8[32768]{0}', space=vmem, size = 0x8000, scoped, tag = 'input window, operand 0']
    #allocation4 [shape = 's32[2]{0}', space=sflag, size = 0x8, scoped, tag = 'scoped memory for tpu_custom_call.1']
    #allocation5 [shape = 's32[2]{0}', space=sflag, size = 0x8, scoped, tag = 'scoped memory for tpu_custom_call.1']
    #allocation6 [shape = 'u8[512]{0}', space=vmem, size = 0x400, scoped, tag = 'input window, operand 1, single buffered']
    #allocation7 [shape = 's32[1]{0}', space=sflag, size = 0x4, scoped, tag = 'scoped memory for tpu_custom_call.1']
    #allocation8 [shape = 'u8[196608]{0}', space=vmem, size = 0x30000, scoped, tag = 'input window, operand 3']
    #allocation9 [shape = 'u8[2048]{0}', space=vmem, size = 0x800, scoped, tag = 'input window, operand 4']
    #allocation10 [shape = 'u8[65536]{0}', space=vmem, size = 0x10000, scoped, tag = 'output window, operand 0']
    %10 = vsyncpa [#allocation4], 0
    %s11 = scalar_lea.sflag [#allocation4], 1
    %12 = vsyncpa %s11, 0
    %13 = vsyncpa [#allocation7], 0
    %14 = vsyncpa [#allocation5], 0
    %s15 = scalar_lea.sflag [#allocation5], 1
    %16 = vsyncpa %s15, 0
    loop: start=0, step=1, limit=6
    $region2: #{tpu_custom_call.1} parent=1 // loop_pre_header
      _
    $region3: #{tpu_custom_call.1} parent=1 // loop_header
      %s18 = sphi 0, %s22
      %p19 = scmp.ge.s32.totalorder %s18, 6
      %s25 = sphi 0, %s37
      %s26 = sphi 0, %s33
      %s27 = sphi 0, %s25
      %s28 = sphi 0, %s26
      %s29 = sphi 0, %s27
      %s30 = sphi 0, %s28
      %s40 = sphi 0, %s42
      %s43 = sphi 0, %s40
      %s44 = sphi 0, %s43
      %s60 = sphi 0, %s44
      %s64 = sphi 0, %s64
      %s66 = sphi 0, %s64
      %s67 = sphi 0, %s66
      %s81 = sphi 0, %s67
      %s85 = sphi 0, %s85
      %s87 = sphi 0, %s85
      %s88 = sphi 0, %s87
      %s102 = sphi 0, %s88
      %s108 = sphi 0, %s110
      %s111 = sphi 0, %s108
      %s112 = sphi 0, %s111
      %s128 = sphi 0, %s112
      %s134 = sphi 0, %s136
      %s137 = sphi 0, %s134
      %s138 = sphi 0, %s137
      %s154 = sphi 0, %s138
      %s162 = sphi 0, %s164
      %s165 = sphi 0, %s162
      %s166 = sphi 0, %s165
      %s182 = sphi 0, %s166
    $region4: #{tpu_custom_call.1} parent=1 // loop_header_branch
      %21 = sbr.rel (%p19) target = $region8
    $region5: #{tpu_custom_call.1} parent=1 // loop_body
      %s23 = ssub.s32 %s18, 1
      %s24 = ssub.s32 %s18, 2
      %s31 = sadd.s32 1, %s26
      %p32 = scmp.ge.s32.totalorder %s31, 2
      %s33 = scalar_select %p32, 0, %s31
      %s34 = sadd.s32 1, %s25
      %s35 = scalar_select %p32, %s34, %s25
      %p36 = scmp.ge.s32.totalorder %s35, 2
      %s37 = scalar_select %p36, 0, %s35
      %s38 = ssub.s32 %s25, %s37
      %p39 = scmp.eq.s32.totalorder %s38, 0
      %s41 = sadd.s32 %s40, 1
      %s42 = scalar_select %p39, %s40, %s41
      %p45 = pneg %p39
      %p46 = scmp.eq.s32.totalorder %s18, 3
      %p47 = por %p45, %p46
      %p48 = scmp.ne.s32.totalorder %s40, %s43
      %p49 = scmp.eq.s32.totalorder %s18, 0
      %p50 = por %p48, %p49
      %p51 = scmp.ne.s32.totalorder %s40, %s43
      %p52 = scmp.eq.s32.totalorder %s23, 3
      %p53 = por %p51, %p52
      %p54 = scmp.ne.s32.totalorder %s43, %s44
      %p55 = scmp.eq.s32.totalorder %s23, 0
      %p56 = por %p54, %p55
      %p57 = scmp.ne.s32.totalorder %s43, %s44
      %p58 = scmp.eq.s32.totalorder %s24, 3
      %p59 = por %p57, %p58
      %p61 = scmp.ne.s32.totalorder %s44, %s60
      %p62 = scmp.eq.s32.totalorder %s24, 0
      %p63 = por %p61, %p62
      %s65 = sadd.s32 %s64, 1
      %p68 = scmp.eq.s32.totalorder %s18, 3
      %p69 = scmp.ne.s32.totalorder %s64, %s66
      %p70 = scmp.eq.s32.totalorder %s18, 0
      %p71 = por %p69, %p70
      %p72 = scmp.ne.s32.totalorder %s64, %s66
      %p73 = scmp.eq.s32.totalorder %s23, 3
      %p74 = por %p72, %p73
      %p75 = scmp.ne.s32.totalorder %s66, %s67
      %p76 = scmp.eq.s32.totalorder %s23, 0
      %p77 = por %p75, %p76
      %p78 = scmp.ne.s32.totalorder %s66, %s67
      %p79 = scmp.eq.s32.totalorder %s24, 3
      %p80 = por %p78, %p79
      %p82 = scmp.ne.s32.totalorder %s67, %s81
      %p83 = scmp.eq.s32.totalorder %s24, 0
      %p84 = por %p82, %p83
      %s86 = sadd.s32 %s85, 1
      %p89 = scmp.eq.s32.totalorder %s18, 3
      %p90 = scmp.ne.s32.totalorder %s85, %s87
      %p91 = scmp.eq.s32.totalorder %s18, 0
      %p92 = por %p90, %p91
      %p93 = scmp.ne.s32.totalorder %s85, %s87
      %p94 = scmp.eq.s32.totalorder %s23, 3
      %p95 = por %p93, %p94
      %p96 = scmp.ne.s32.totalorder %s87, %s88
      %p97 = scmp.eq.s32.totalorder %s23, 0
      %p98 = por %p96, %p97
      %p99 = scmp.ne.s32.totalorder %s87, %s88
      %p100 = scmp.eq.s32.totalorder %s24, 3
      %p101 = por %p99, %p100
      %p103 = scmp.ne.s32.totalorder %s88, %s102
      %p104 = scmp.eq.s32.totalorder %s24, 0
      %p105 = por %p103, %p104
      %s106 = ssub.s32 %s26, %s33
      %p107 = scmp.eq.s32.totalorder %s106, 0
      %s109 = sadd.s32 %s108, 1
      %s110 = scalar_select %p107, %s108, %s109
      %p113 = pneg %p107
      %p114 = scmp.eq.s32.totalorder %s18, 3
      %p115 = por %p113, %p114
      %p116 = scmp.ne.s32.totalorder %s108, %s111
      %p117 = scmp.eq.s32.totalorder %s18, 0
      %p118 = por %p116, %p117
      %p119 = scmp.ne.s32.totalorder %s108, %s111
      %p120 = scmp.eq.s32.totalorder %s23, 3
      %p121 = por %p119, %p120
      %p122 = scmp.ne.s32.totalorder %s111, %s112
      %p123 = scmp.eq.s32.totalorder %s23, 0
      %p124 = por %p122, %p123
      %p125 = scmp.ne.s32.totalorder %s111, %s112
      %p126 = scmp.eq.s32.totalorder %s24, 3
      %p127 = por %p125, %p126
      %p129 = scmp.ne.s32.totalorder %s112, %s128
      %p130 = scmp.eq.s32.totalorder %s24, 0
      %p131 = por %p129, %p130
      %s132 = ssub.s32 %s26, %s33
      %p133 = scmp.eq.s32.totalorder %s132, 0
      %s135 = sadd.s32 %s134, 1
      %s136 = scalar_select %p133, %s134, %s135
      %p139 = pneg %p133
      %p140 = scmp.eq.s32.totalorder %s18, 3
      %p141 = por %p139, %p140
      %p142 = scmp.ne.s32.totalorder %s134, %s137
      %p143 = scmp.eq.s32.totalorder %s18, 0
      %p144 = por %p142, %p143
      %p145 = scmp.ne.s32.totalorder %s134, %s137
      %p146 = scmp.eq.s32.totalorder %s23, 3
      %p147 = por %p145, %p146
      %p148 = scmp.ne.s32.totalorder %s137, %s138
      %p149 = scmp.eq.s32.totalorder %s23, 0
      %p150 = por %p148, %p149
      %p151 = scmp.ne.s32.totalorder %s137, %s138
      %p152 = scmp.eq.s32.totalorder %s24, 3
      %p153 = por %p151, %p152
      %p155 = scmp.ne.s32.totalorder %s138, %s154
      %p156 = scmp.eq.s32.totalorder %s24, 0
      %p157 = por %p155, %p156
      %s158 = ssub.s32 %s25, %s37
      %s159 = ssub.s32 %s26, %s33
      %s160 = sor.u32 %s158, %s159
      %p161 = scmp.eq.s32.totalorder %s160, 0
      %s163 = sadd.s32 %s162, 1
      %s164 = scalar_select %p161, %s162, %s163
      %p167 = pneg %p161
      %p168 = scmp.eq.s32.totalorder %s18, 3
      %p169 = por %p167, %p168
      %p170 = scmp.ne.s32.totalorder %s162, %s165
      %p171 = scmp.eq.s32.totalorder %s18, 0
      %p172 = por %p170, %p171
      %p173 = scmp.ne.s32.totalorder %s162, %s165
      %p174 = scmp.eq.s32.totalorder %s23, 3
      %p175 = por %p173, %p174
      %p176 = scmp.ne.s32.totalorder %s165, %s166
      %p177 = scmp.eq.s32.totalorder %s23, 0
      %p178 = por %p176, %p177
      %p179 = scmp.ne.s32.totalorder %s165, %s166
      %p180 = scmp.eq.s32.totalorder %s24, 3
      %p181 = por %p179, %p180
      %p183 = scmp.ne.s32.totalorder %s166, %s182
      %p184 = scmp.eq.s32.totalorder %s24, 0
      %p185 = por %p183, %p184
      %p186 = scmp.le.s32.totalorder 1, %s18
      %p187 = scmp.lt.s32.totalorder %s18, 5
      %p188 = pnand %p186, %p187
      %p189 = pneg %p188
      // Predicated region
      $region9: #{tpu_custom_call.1} parent=5 // pred_check
        _
      $region10: #{tpu_custom_call.1} parent=5 // pred_check_branch
        %191 = sbr.rel (%p188) target = $region12
      $region11: #{tpu_custom_call.1} parent=5 // pred_region
        %s192 = ssub.s32 %s18, 1
        // Predicated region
        $region13: #{tpu_custom_call.1} parent=11 // pred_check
          %p193 = pneg %p77
        $region14: #{tpu_custom_call.1} parent=11 // pred_check_branch
          %195 = sbr.rel (%p193) target = $region16
        $region15: #{tpu_custom_call.1} parent=11 // pred_region
          %197 = vsyncadd [#allocation7], 0
          %s199 = sshll.u32 %s1, 4
          %s200 = int_to_ptr.hbm [resolvable:$true] %s199
          %s201 = sshll.u32 [#allocation6], 4
          %s202 = int_to_ptr.vmem [resolvable:$true] %s201
          %204 = dma.hbm_to_vmem [thread:$0]  %s200, 16, %s202, [#allocation7]
        $region16: #{tpu_custom_call.1} parent=11 // pred_fallthru
          _
        // Predicated region
        $region17: #{tpu_custom_call.1} parent=11 // pred_check
          %p205 = pneg %p98
        $region18: #{tpu_custom_call.1} parent=11 // pred_check_branch
          %207 = sbr.rel (%p205) target = $region20
        $region19: #{tpu_custom_call.1} parent=11 // pred_region
          _
        $region20: #{tpu_custom_call.1} parent=11 // pred_fallthru
          _
      $region12: #{tpu_custom_call.1} parent=5 // pred_fallthru
        _
      %p208 = scmp.lt.s32.totalorder %s18, 4
      // Predicated region
      $region21: #{tpu_custom_call.1} parent=5 // pred_check
        %p209 = pneg %p208
      $region22: #{tpu_custom_call.1} parent=5 // pred_check_branch
        %211 = sbr.rel (%p209) target = $region24
      $region23: #{tpu_custom_call.1} parent=5 // pred_region
        // Predicated region
        $region25: #{tpu_custom_call.1} parent=23 // pred_check
          %p212 = pneg %p50
        $region26: #{tpu_custom_call.1} parent=23 // pred_check_branch
          %214 = sbr.rel (%p212) target = $region28
        $region27: #{tpu_custom_call.1} parent=23 // pred_region
          %s215 = sand.u32 %s18, 1
          %s216 = scalar_lea.sflag [#allocation4], %s215
          %s217 = sand.u32 %s40, 1
          %s218 = smul.addr %s217, 32
          %s219 = scalar_lea.vmem [#allocation3], %s218
          %s220 = smul.u32 4, %s25
          %222 = vsyncadd %s216, 0
          %s223 = smul.addr %s220, 8
          %s224 = scalar_lea.hbm %s0, %s223
          %s225 = sshll.u32 %s224, 4
          %s226 = int_to_ptr.hbm [resolvable:$true] %s225
          %s227 = sshll.u32 %s219, 4
          %s228 = int_to_ptr.vmem [resolvable:$true] %s227
          %233 = dma.hbm_to_vmem [thread:$0]  %s226, 512, %s228, %s216, 128, 128, 8
        $region28: #{tpu_custom_call.1} parent=23 // pred_fallthru
          _
        // Predicated region
        $region29: #{tpu_custom_call.1} parent=23 // pred_check
          %p234 = pneg %p118
        $region30: #{tpu_custom_call.1} parent=23 // pred_check_branch
          %236 = sbr.rel (%p234) target = $region32
        $region31: #{tpu_custom_call.1} parent=23 // pred_region
          %s237 = sand.u32 %s18, 1
          %s238 = scalar_lea.sflag [#allocation4], %s237
          %s239 = sand.u32 %s108, 1
          %s240 = smul.addr %s239, 192
          %s241 = scalar_lea.vmem [#allocation8], %s240
          %s242 = smul.u32 2, %s26
          %244 = vsyncadd %s238, 0
          %s245 = smul.addr %s242, 8
          %s246 = scalar_lea.hbm %s3, %s245
          %s247 = sshll.u32 %s246, 4
          %s248 = int_to_ptr.hbm [resolvable:$true] %s247
          %s249 = sshll.u32 %s241, 4
          %s250 = int_to_ptr.vmem [resolvable:$true] %s249
          %255 = dma.hbm_to_vmem [thread:$0]  %s248, 3072, %s250, %s238, 512, 256, 16
        $region32: #{tpu_custom_call.1} parent=23 // pred_fallthru
          _
        // Predicated region
        $region33: #{tpu_custom_call.1} parent=23 // pred_check
          %p256 = pneg %p144
        $region34: #{tpu_custom_call.1} parent=23 // pred_check_branch
          %258 = sbr.rel (%p256) target = $region36
        $region35: #{tpu_custom_call.1} parent=23 // pred_region
          %s259 = sand.u32 %s18, 1
          %s260 = scalar_lea.sflag [#allocation4], %s259
          %s261 = sand.u32 %s134, 1
          %s262 = smul.addr %s261, 2
          %s263 = scalar_lea.vmem [#allocation9], %s262
          %s264 = smul.u32 2, %s26
          %266 = vsyncadd %s260, 0
          %s267 = scalar_lea.hbm %s4, %s264
          %s269 = sshll.u32 %s267, 4
          %s270 = int_to_ptr.hbm [resolvable:$true] %s269
          %s271 = sshll.u32 %s263, 4
          %s272 = int_to_ptr.vmem [resolvable:$true] %s271
          %274 = dma.hbm_to_vmem [thread:$0]  %s270, 32, %s272, %s260
        $region36: #{tpu_custom_call.1} parent=23 // pred_fallthru
          _
      $region24: #{tpu_custom_call.1} parent=5 // pred_fallthru
        _
      %p275 = scmp.le.s32.totalorder 1, %s18
      %p276 = scmp.lt.s32.totalorder %s18, 5
      %p277 = pnand %p275, %p276
      %p278 = pneg %p277
      // Predicated region
      $region37: #{tpu_custom_call.1} parent=5 // pred_check
        _
      $region38: #{tpu_custom_call.1} parent=5 // pred_check_branch
        %280 = sbr.rel (%p277) target = $region40
      $region39: #{tpu_custom_call.1} parent=5 // pred_region
        %s281 = ssub.s32 %s18, 1
        %s282 = sand.u32 %s23, 1
        %s283 = scalar_lea.sflag [#allocation4], %s282
        %s284 = sand.u32 %s43, 1
        %s285 = smul.addr %s284, 32
        %s286 = scalar_lea.vmem [#allocation3], %s285
        // Predicated region
        $region41: #{tpu_custom_call.1} parent=39 // pred_check
          %p287 = pneg %p56
        $region42: #{tpu_custom_call.1} parent=39 // pred_check_branch
          %289 = sbr.rel (%p287) target = $region44
        $region43: #{tpu_custom_call.1} parent=39 // pred_region
          %291 = dma.done %s283, 512
        $region44: #{tpu_custom_call.1} parent=39 // pred_fallthru
          _
        // Predicated region
        $region45: #{tpu_custom_call.1} parent=39 // pred_check
          %p292 = pneg %p77
        $region46: #{tpu_custom_call.1} parent=39 // pred_check_branch
          %294 = sbr.rel (%p292) target = $region48
        $region47: #{tpu_custom_call.1} parent=39 // pred_region
          %296 = dma.done [#allocation7], 16
        $region48: #{tpu_custom_call.1} parent=39 // pred_fallthru
          _
        %s297 = sand.u32 %s23, 1
        %s298 = scalar_lea.sflag [#allocation4], %s297
        %s299 = sand.u32 %s111, 1
        %s300 = smul.addr %s299, 192
        %s301 = scalar_lea.vmem [#allocation8], %s300
        // Predicated region
        $region49: #{tpu_custom_call.1} parent=39 // pred_check
          %p302 = pneg %p124
        $region50: #{tpu_custom_call.1} parent=39 // pred_check_branch
          %304 = sbr.rel (%p302) target = $region52
        $region51: #{tpu_custom_call.1} parent=39 // pred_region
          %306 = dma.done %s298, 3072
        $region52: #{tpu_custom_call.1} parent=39 // pred_fallthru
          _
        %s307 = sand.u32 %s23, 1
        %s308 = scalar_lea.sflag [#allocation4], %s307
        %s309 = sand.u32 %s137, 1
        %s310 = smul.addr %s309, 2
        %s311 = scalar_lea.vmem [#allocation9], %s310
        // Predicated region
        $region53: #{tpu_custom_call.1} parent=39 // pred_check
          %p312 = pneg %p150
        $region54: #{tpu_custom_call.1} parent=39 // pred_check_branch
          %314 = sbr.rel (%p312) target = $region56
        $region55: #{tpu_custom_call.1} parent=39 // pred_region
          %316 = dma.done %s308, 32
        $region56: #{tpu_custom_call.1} parent=39 // pred_fallthru
          _
        %s317 = sand.u32 %s23, 1
        %s318 = scalar_lea.sflag [#allocation4], %s317
        %s319 = sand.u32 %s43, 1
        %s320 = smul.addr %s319, 32
        %s321 = scalar_lea.vmem [#allocation3], %s320
        %p322 = pneg %p56
        %p323 = pneg %p53
        %p324 = pneg %p77
        %p325 = pneg %p74
        %p326 = pneg %p98
        %p327 = pneg %p95
        %s328 = sand.u32 %s23, 1
        %s329 = scalar_lea.sflag [#allocation4], %s328
        %s330 = sand.u32 %s111, 1
        %s331 = smul.addr %s330, 192
        %s332 = scalar_lea.vmem [#allocation8], %s331
        %p333 = pneg %p124
        %p334 = pneg %p121
        %s335 = sand.u32 %s23, 1
        %s336 = scalar_lea.sflag [#allocation4], %s335
        %s337 = sand.u32 %s137, 1
        %s338 = smul.addr %s337, 2
        %s339 = scalar_lea.vmem [#allocation9], %s338
        %p340 = pneg %p150
        %p341 = pneg %p147
        %p342 = pneg %p178
        %p343 = pneg %p175
        %s344 = sand.u32 %s165, 1
        %s345 = scalar_lea.sflag [#allocation5], %s344
        %s346 = sand.u32 %s165, 1
        %s347 = smul.addr %s346, 64
        %s348 = scalar_lea.vmem [#allocation10], %s347
        %s349 = smul.u32 4, %s27
        %s350 = smul.u32 2, %s28
        %s351 = smul.u32 2, %s28
        %s352 = smul.u32 4, %s27
        %s353 = smul.u32 2, %s28
        %p354 = scmp.eq.s32.totalorder %s28, 0
        // Predicated region
        $region57: #{tpu_custom_call.1} parent=39 // pred_check
          %p355 = pneg %p354
        $region58: #{tpu_custom_call.1} parent=39 // pred_check_branch
          %357 = sbr.rel (%p355) target = $region60
        $region59: #{tpu_custom_call.1} parent=39 // pred_region
          %v358 = vld [vmem:[%s286] sm:$0xff]
          %v359 = vld [vmem:[%s286 + $0x8] sm:$0xff]
          %v360 = vld [vmem:[%s286 + $0x10] sm:$0xff]
          %v361 = vld [vmem:[%s286 + $0x18] sm:$0xff]
          %vm362 = vcmask 785408
          %v363 = vsel %vm362, %v358, 0.0
          %364 = vadd.xlane.f32.xlu0 %v363
          %v365 = vpop.xlane.xlu0 %364
          %v366 = vsel %vm362, %v359, 0.0
          %367 = vadd.xlane.f32.xlu0 %v366
          %v368 = vpop.xlane.xlu0 %367
          %v369 = vsel %vm362, %v360, 0.0
          %370 = vadd.xlane.f32.xlu0 %v369
          %v371 = vpop.xlane.xlu0 %370
          %v372 = vsel %vm362, %v361, 0.0
          %373 = vadd.xlane.f32.xlu0 %v372
          %v374 = vpop.xlane.xlu0 %373
          %v375 = vrcp.pop 96.0
          %v376 = vmul.f32 96.0, %v375
          %v377 = vsub.f32 1.0, %v376
          %v378 = vmul.f32 %v375, %v377
          %v379 = vadd.f32 %v375, %v378
          %vm380 = vweird.f32 %v375
          %v381 = vsel %vm380, %v375, %v379
          %v382 = vmul.f32 %v365, %v381
          %v383 = vmul.f32 %v368, %v381
          %v384 = vmul.f32 %v371, %v381
          %v385 = vmul.f32 %v374, %v381
          %v386 = vsub.f32 %v358, %v382
          %v387 = vsub.f32 %v359, %v383
          %v388 = vsub.f32 %v360, %v384
          %v389 = vsub.f32 %v361, %v385
          %v390 = vmul.f32 %v386, %v386
          %v391 = vmul.f32 %v387, %v387
          %v392 = vmul.f32 %v388, %v388
          %v393 = vmul.f32 %v389, %v389
          %v394 = vsel %vm362, %v390, 0.0
          %395 = vadd.xlane.f32.xlu0 %v394
          %v396 = vpop.xlane.xlu0 %395
          %v397 = vsel %vm362, %v391, 0.0
          %398 = vadd.xlane.f32.xlu0 %v397
          %v399 = vpop.xlane.xlu0 %398
          %v400 = vsel %vm362, %v392, 0.0
          %401 = vadd.xlane.f32.xlu0 %v400
          %v402 = vpop.xlane.xlu0 %401
          %v403 = vsel %vm362, %v393, 0.0
          %404 = vadd.xlane.f32.xlu0 %v403
          %v405 = vpop.xlane.xlu0 %404
          %v406 = vmul.f32 %v396, %v381
          %v407 = vmul.f32 %v399, %v381
          %v408 = vmul.f32 %v402, %v381
          %v409 = vmul.f32 %v405, %v381
          %v410 = vadd.f32 %v406, 1e-05
          %v411 = vadd.f32 %v407, 1e-05
          %v412 = vadd.f32 %v408, 1e-05
          %v413 = vadd.f32 %v409, 1e-05
          %v414 = vrsqrt.pop %v410
          %v415 = vmul.f32 %v414, %v410
          %v416 = vmul.f32 %v415, %v414
          %v417 = vmul.f32 0.5, %v416
          %v418 = vsub.f32 1.5, %v417
          %v419 = vmul.f32 %v414, %v418
          %vm420 = vweird.f32 %v410
          %vm421 = vweird.f32 %v414
          %vm422 = vmor %vm420, %vm421
          %v423 = vsel %vm422, %v414, %v419
          %v424 = vrsqrt.pop %v411
          %v425 = vmul.f32 %v424, %v411
          %v426 = vmul.f32 %v425, %v424
          %v427 = vmul.f32 0.5, %v426
          %v428 = vsub.f32 1.5, %v427
          %v429 = vmul.f32 %v424, %v428
          %vm430 = vweird.f32 %v411
          %vm431 = vweird.f32 %v424
          %vm432 = vmor %vm430, %vm431
          %v433 = vsel %vm432, %v424, %v429
          %v434 = vrsqrt.pop %v412
          %v435 = vmul.f32 %v434, %v412
          %v436 = vmul.f32 %v435, %v434
          %v437 = vmul.f32 0.5, %v436
          %v438 = vsub.f32 1.5, %v437
          %v439 = vmul.f32 %v434, %v438
          %vm440 = vweird.f32 %v412
          %vm441 = vweird.f32 %v434
          %vm442 = vmor %vm440, %vm441
          %v443 = vsel %vm442, %v434, %v439
          %v444 = vrsqrt.pop %v413
          %v445 = vmul.f32 %v444, %v413
          %v446 = vmul.f32 %v445, %v444
          %v447 = vmul.f32 0.5, %v446
          %v448 = vsub.f32 1.5, %v447
          %v449 = vmul.f32 %v444, %v448
          %vm450 = vweird.f32 %v413
          %vm451 = vweird.f32 %v444
          %vm452 = vmor %vm450, %vm451
          %v453 = vsel %vm452, %v444, %v449
          %v454 = vmul.f32 %v386, %v423
          %v455 = vmul.f32 %v387, %v433
          %v456 = vmul.f32 %v388, %v443
          %v457 = vmul.f32 %v389, %v453
          %v458 = vld [vmem:[#allocation6] sm:$0x1]
          %v460 = vperm.slane %v458, 0
          %v462 = vmul.f32 %v454, %v460
          %v463 = vmul.f32 %v455, %v460
          %v464 = vmul.f32 %v456, %v460
          %v465 = vmul.f32 %v457, %v460
          %v466 = vld [vmem:[%s2] sm:$0x1]
          %v468 = vperm.slane %v466, 0
          %v470 = vadd.f32 %v462, %v468
          %v471 = vadd.f32 %v463, %v468
          %v472 = vadd.f32 %v464, %v468
          %v473 = vadd.f32 %v465, %v468
          %474 = vst.msk [vmem:[#allocation2] sm:$0xff] %vm362, %v470
          %475 = vst.msk [vmem:[#allocation2 + $0x8] sm:$0xff] %vm362, %v471
          %476 = vst.msk [vmem:[#allocation2 + $0x10] sm:$0xff] %vm362, %v472
          %477 = vst.msk [vmem:[#allocation2 + $0x18] sm:$0xff] %vm362, %v473
        $region60: #{tpu_custom_call.1} parent=39 // pred_fallthru
          _
        %v478 = vld [vmem:[#allocation2] sm:$0xff]
        %v479 = vld [vmem:[#allocation2 + $0x8] sm:$0xff]
        %v480 = vld [vmem:[#allocation2 + $0x10] sm:$0xff]
        %v481 = vld [vmem:[#allocation2 + $0x18] sm:$0xff]
        %v482 = vld [vmem:[%s301] sm:$0xff]
        %v483 = vld [vmem:[%s301 + $0x8] sm:$0xff]
        %v484 = vld [vmem:[%s301 + $0x10] sm:$0xff]
        %v485 = vld [vmem:[%s301 + $0x18] sm:$0xff]
        %v486 = vld [vmem:[%s301 + $0x20] sm:$0xff]
        %v487 = vld [vmem:[%s301 + $0x28] sm:$0xff]
        %v488 = vld [vmem:[%s301 + $0x30] sm:$0xff]
        %v489 = vld [vmem:[%s301 + $0x38] sm:$0xff]
        %v490 = vld [vmem:[%s301 + $0x40] sm:$0xff]
        %v491 = vld [vmem:[%s301 + $0x48] sm:$0xff]
        %v492 = vld [vmem:[%s301 + $0x50] sm:$0xff]
        %v493 = vld [vmem:[%s301 + $0x58] sm:$0xff]
        %v494 = vld [vmem:[%s301 + $0x60] sm:$0xff]
        %v495 = vld [vmem:[%s301 + $0x68] sm:$0xff]
        %v496 = vld [vmem:[%s301 + $0x70] sm:$0xff]
        %v497 = vld [vmem:[%s301 + $0x78] sm:$0xff]
        %v498 = vld [vmem:[%s301 + $0x80] sm:$0xff]
        %v499 = vld [vmem:[%s301 + $0x88] sm:$0xff]
        %v500 = vld [vmem:[%s301 + $0x90] sm:$0xff]
        %v501 = vld [vmem:[%s301 + $0x98] sm:$0xff]
        %v502 = vld [vmem:[%s301 + $0xa0] sm:$0xff]
        %v503 = vld [vmem:[%s301 + $0xa8] sm:$0xff]
        %v504 = vld [vmem:[%s301 + $0xb0] sm:$0xff]
        %v505 = vld [vmem:[%s301 + $0xb8] sm:$0xff]
        %v506 = vld [vmem:[%s311] sm:$0x3]
        %v508 = vperm.slane %v506, 0
        %v509 = vperm.slane %v506, 1
        %vm512 = vcmask 785408
        %v514 = vsel %vm512, %v478, 0
        %v517 = vsel %vm512, %v479, 0
        %v520 = vsel %vm512, %v480, 0
        %v523 = vsel %vm512, %v481, 0
        %525 = vmatpush.msra.mxu0 0.0
        %526 = vmatpush.msra.mxu0 0.0
        %527 = vmatpush.msra.mxu0 0.0
        %528 = vmatpush.msra.mxu0 0.0
        %529 = vmatpush.msra.mxu0 %v504
        %530 = vmatpush.msra.mxu0 %v502
        %531 = vmatpush.msra.mxu0 %v500
        %532 = vmatpush.msra.mxu0 %v498
        %533 = vmatpush.msra.mxu0 %v496
        %534 = vmatpush.msra.mxu0 %v494
        %535 = vmatpush.msra.mxu0 %v492
        %536 = vmatpush.msra.mxu0 %v490
        %537 = vmatpush.msra.mxu0 %v488
        %538 = vmatpush.msra.mxu0 %v486
        %539 = vmatpush.msra.mxu0 %v484
        %540 = vmatpush.msra.mxu0 %v482
        %541 = vmatmul.f32.gmra.mxu0 %v514
        %v542 = vpop.f32.mrf.mxu0
        %v543 = vadd.f32 %v508, %v542
        %544 = vmatmul.f32.gmra.mxu0 %v517
        %v545 = vpop.f32.mrf.mxu0
        %v546 = vadd.f32 %v508, %v545
        %547 = vmatmul.f32.gmra.mxu0 %v520
        %v548 = vpop.f32.mrf.mxu0
        %v549 = vadd.f32 %v508, %v548
        %550 = vmatmul.f32.gmra.mxu0 %v523
        %v551 = vpop.f32.mrf.mxu0
        %v552 = vadd.f32 %v508, %v551
        %553 = vdwg.mxu0
        %554 = vmatpush.msra.mxu0 0.0
        %555 = vmatpush.msra.mxu0 0.0
        %556 = vmatpush.msra.mxu0 0.0
        %557 = vmatpush.msra.mxu0 0.0
        %558 = vmatpush.msra.mxu0 %v505
        %559 = vmatpush.msra.mxu0 %v503
        %560 = vmatpush.msra.mxu0 %v501
        %561 = vmatpush.msra.mxu0 %v499
        %562 = vmatpush.msra.mxu0 %v497
        %563 = vmatpush.msra.mxu0 %v495
        %564 = vmatpush.msra.mxu0 %v493
        %565 = vmatpush.msra.mxu0 %v491
        %566 = vmatpush.msra.mxu0 %v489
        %567 = vmatpush.msra.mxu0 %v487
        %568 = vmatpush.msra.mxu0 %v485
        %569 = vmatpush.msra.mxu0 %v483
        %570 = vmatmul.f32.gmra.mxu0 %v514
        %v571 = vpop.f32.mrf.mxu0
        %v572 = vadd.f32 %v509, %v571
        %573 = vmatmul.f32.gmra.mxu0 %v517
        %v574 = vpop.f32.mrf.mxu0
        %v575 = vadd.f32 %v509, %v574
        %576 = vmatmul.f32.gmra.mxu0 %v520
        %v577 = vpop.f32.mrf.mxu0
        %v578 = vadd.f32 %v509, %v577
        %579 = vmatmul.f32.gmra.mxu0 %v523
        %v580 = vpop.f32.mrf.mxu0
        %v581 = vadd.f32 %v509, %v580
        %582 = vdwg.mxu0
        %v583 = vmax.f32 %v543, 0.0
        %v584 = vmax.f32 %v572, 0.0
        %v585 = vmax.f32 %v546, 0.0
        %v586 = vmax.f32 %v575, 0.0
        %v587 = vmax.f32 %v549, 0.0
        %v588 = vmax.f32 %v578, 0.0
        %v589 = vmax.f32 %v552, 0.0
        %v590 = vmax.f32 %v581, 0.0
        %591 = vst [vmem:[%s348] sm:$0xff] %v583
        %592 = vst [vmem:[%s348 + $0x8] sm:$0xff] %v584
        %593 = vst [vmem:[%s348 + $0x10] sm:$0xff] %v585
        %594 = vst [vmem:[%s348 + $0x18] sm:$0xff] %v586
        %595 = vst [vmem:[%s348 + $0x20] sm:$0xff] %v587
        %596 = vst [vmem:[%s348 + $0x28] sm:$0xff] %v588
        %597 = vst [vmem:[%s348 + $0x30] sm:$0xff] %v589
        %598 = vst [vmem:[%s348 + $0x38] sm:$0xff] %v590
        %s599 = sand.u32 %s165, 1
        %s600 = scalar_lea.sflag [#allocation5], %s599
        %s601 = sand.u32 %s165, 1
        %s602 = smul.addr %s601, 64
        %s603 = scalar_lea.vmem [#allocation10], %s602
        // Predicated region
        $region61: #{tpu_custom_call.1} parent=39 // pred_check
          %p604 = pneg %p175
        $region62: #{tpu_custom_call.1} parent=39 // pred_check_branch
          %606 = sbr.rel (%p604) target = $region64
        $region63: #{tpu_custom_call.1} parent=39 // pred_region
          %s607 = smul.u32 4, %s27
          %s608 = smul.u32 2, %s28
          %610 = vsyncadd %s600, 0
          %s611 = smul.addr %s607, 4
          %s612 = sadd.s32 %s608, %s611
          %s613 = smul.addr %s612, 8
          %s614 = scalar_lea.hbm %s5, %s613
          %s615 = sshll.u32 %s603, 4
          %s616 = int_to_ptr.vmem [resolvable:$true] %s615
          %s617 = sshll.u32 %s614, 4
          %s618 = int_to_ptr.hbm [resolvable:$true] %s617
          %623 = dma.vmem_to_hbm [thread:$0]  %s616, 1024, %s618, %s600, 256, 512, 16
        $region64: #{tpu_custom_call.1} parent=39 // pred_fallthru
          _
      $region40: #{tpu_custom_call.1} parent=5 // pred_fallthru
        _
      %p624 = scmp.le.s32.totalorder 2, %s18
      // Predicated region
      $region65: #{tpu_custom_call.1} parent=5 // pred_check
        %p625 = pneg %p624
      $region66: #{tpu_custom_call.1} parent=5 // pred_check_branch
        %627 = sbr.rel (%p625) target = $region68
      $region67: #{tpu_custom_call.1} parent=5 // pred_region
        %s628 = ssub.s32 %s18, 2
        // Predicated region
        $region69: #{tpu_custom_call.1} parent=67 // pred_check
          %p629 = pneg %p181
        $region70: #{tpu_custom_call.1} parent=67 // pred_check_branch
          %631 = sbr.rel (%p629) target = $region72
        $region71: #{tpu_custom_call.1} parent=67 // pred_region
          %s632 = sand.u32 %s166, 1
          %s633 = scalar_lea.sflag [#allocation5], %s632
          %s634 = sand.u32 %s166, 1
          %s635 = smul.addr %s634, 64
          %s636 = scalar_lea.vmem [#allocation10], %s635
          %638 = dma.done %s633, 1024
        $region72: #{tpu_custom_call.1} parent=67 // pred_fallthru
          _
      $region68: #{tpu_custom_call.1} parent=5 // pred_fallthru
        _
    $region6: #{tpu_custom_call.1} parent=1 // loop_footer
      %s22 = sadd.s32 1, %s18
    $region7: #{tpu_custom_call.1} parent=1 // loop_footer_branch
      %17 = sbr.rel target = $region3
    $region8: #{tpu_custom_call.1} parent=1 // loop_exit
      _
    %639 = vsyncpa [#allocation4], 1
    %s640 = scalar_lea.sflag [#allocation4], 1
    %641 = vsyncpa %s640, 1
    %642 = vsyncpa [#allocation7], 1
    %643 = vsyncpa [#allocation5], 1
    %s644 = scalar_lea.sflag [#allocation5], 1
    %645 = vsyncpa %s644, 1

</llo_original>
